<compile_context>
chip_gen: v6e
topology: v6e:2x2x1
jax: 0.10.0
libtpu: 0.0.40
codegen_flags: <defaults>
</compile_context>

<pallas_src>
import functools

import jax
import jax.numpy as jnp
import numpy as np
from jax import lax
from jax.experimental import pallas as pl
from jax.experimental.pallas import tpu as pltpu


def _round_up(x, m):
    return ((x + m - 1) // m) * m


def _phase0_kernel(points_ref, planes_ref, convex_ref, concave_ref,
                   h2_ref, h3_ref, *, use_bf16):
    pts = points_ref[0]                              # [TN, 4]   f32
    pls = planes_ref[0]                              # [4, Ppad] f32
    h1 = jnp.maximum(jnp.dot(pts, pls, preferred_element_type=jnp.float32), 0.0)
    if use_bf16:
        h2 = jnp.dot(h1.astype(jnp.bfloat16), convex_ref[...],
                     preferred_element_type=jnp.float32)
    else:
        h2 = jnp.dot(h1, convex_ref[...], preferred_element_type=jnp.float32)
    h2 = jnp.clip(1.0 - h2, 0.0, 1.0)                # [TN, Cpad]
    h2_ref[0, :, :] = h2.astype(h2_ref.dtype)
    # concave layer has output width 1: do it as a broadcast-mul + row reduce (VPU+XLU)
    # instead of a 1-lane MXU matmul. Padded convex columns have concave weight 0.
    h3 = jnp.sum(h2 * concave_ref[...], axis=-1, keepdims=True)   # [TN, 1]
    h3_ref[0, :, :] = jnp.clip(h3, 0.0, 1.0).astype(h3_ref.dtype)


def _phase12_kernel(points_ref, planes_ref, convex_bin_ref,
                    h2_ref, h3_ref, *, c_dim, use_bf16):
    pts = points_ref[0]
    pls = planes_ref[0]
    h1 = jnp.maximum(jnp.dot(pts, pls, preferred_element_type=jnp.float32), 0.0)
    if use_bf16:
        h2 = jnp.dot(h1.astype(jnp.bfloat16), convex_bin_ref[...],
                     preferred_element_type=jnp.float32)
    else:
        h2 = jnp.dot(h1, convex_bin_ref[...], preferred_element_type=jnp.float32)
    h2_ref[0, :, :] = h2.astype(h2_ref.dtype)
    # min only over the real c_dim columns (padded columns are zeros and must not win).
    col = lax.broadcasted_iota(jnp.int32, h2.shape, 1)
    h3 = jnp.min(jnp.where(col < c_dim, h2, jnp.inf), axis=-1, keepdims=True)
    h3_ref[0, :, :] = h3.astype(h3_ref.dtype)


def generator_forward(points, planes, convex_w, concave_w, phase=0,
                      *, tn=256, use_bf16=False):
    """Pallas TPU implementation of generator.forward.

    points:    [B, N, 3] or [B, N, 4] float32
    planes:    [B, 4, p_dim]          float32
    convex_w:  [p_dim, c_dim]         float32   (convex_layer_weights)
    concave_w: [c_dim, 1]             float32   (concave_layer_weights)
    Returns (h2 [B, N, c_dim], h3 [B, N, 1]).
    """
    B, N, pd = points.shape
    if pd == 3:
        points = jnp.concatenate(
            [points, jnp.ones((B, N, 1), points.dtype)], axis=-1)
    points = points.astype(jnp.float32)
    planes = planes.astype(jnp.float32)

    p_dim, c_dim = convex_w.shape
    assert planes.shape == (B, 4, p_dim)

    p_pad = _round_up(p_dim, 128)
    c_pad = _round_up(c_dim, 128)
    tn = min(tn, _round_up(N, 128))          # point-tile size (multiple of 128)
    n_pad = _round_up(N, tn)

    # Zero-pad feature dims (aligned MXU K, lane-dense stores) and the point dim.
    points_p = jnp.pad(points, ((0, 0), (0, n_pad - N), (0, 0)))
    planes_p = jnp.pad(planes, ((0, 0), (0, 0), (0, p_pad - p_dim)))

    mm_dtype = jnp.bfloat16 if use_bf16 else jnp.float32

    grid = (B, n_pad // tn)
    points_spec = pl.BlockSpec((1, tn, 4), lambda b, n: (b, n, 0))
    planes_spec = pl.BlockSpec((1, 4, p_pad), lambda b, n: (b, 0, 0))
    convex_spec = pl.BlockSpec((p_pad, c_pad), lambda b, n: (0, 0))
    concave_spec = pl.BlockSpec((1, c_pad), lambda b, n: (0, 0))
    h2_spec = pl.BlockSpec((1, tn, c_pad), lambda b, n: (b, n, 0))
    h3_spec = pl.BlockSpec((1, tn, 1), lambda b, n: (b, n, 0))
    out_shape = (jax.ShapeDtypeStruct((B, n_pad, c_pad), jnp.float32),
                 jax.ShapeDtypeStruct((B, n_pad, 1), jnp.float32))

    # Explicit scoped-VMEM budget: double-buffered tiles + in-kernel temporaries,
    # never below the 32 MiB default.
    wbytes = 2 if use_bf16 else 4
    vmem = 2 * (4 * tn * 4 + 4 * 4 * p_pad + wbytes * p_pad * c_pad
                + 4 * c_pad + 4 * tn * c_pad + 4 * tn)
    vmem += 4 * tn * p_pad + 3 * 4 * tn * c_pad
    cparams = pltpu.CompilerParams(
        dimension_semantics=("parallel", "parallel"),
        vmem_limit_bytes=int(min(max(2 * vmem, 32 * 1024 * 1024),
                                 100 * 1024 * 1024)),
    )

    if phase == 0:
        convex_p = jnp.pad(convex_w.astype(jnp.float32),
                           ((0, p_pad - p_dim), (0, c_pad - c_dim))).astype(mm_dtype)
        # concave passed as a [1, Cpad] row; zero padding => padded convexes add nothing.
        concave_p = jnp.pad(concave_w.astype(jnp.float32).reshape(1, c_dim),
                            ((0, 0), (0, c_pad - c_dim)))
        kernel = functools.partial(_phase0_kernel, use_bf16=use_bf16)
        h2_p, h3_p = pl.pallas_call(
            kernel,
            grid=grid,
            in_specs=[points_spec, planes_spec, convex_spec, concave_spec],
            out_specs=(h2_spec, h3_spec),
            out_shape=out_shape,
            compiler_params=cparams,
        )(points_p, planes_p, convex_p, concave_p)
    elif phase in (1, 2):
        convex_bin = (convex_w > 0.01).astype(jnp.float32)
        convex_p = jnp.pad(convex_bin,
                           ((0, p_pad - p_dim), (0, c_pad - c_dim))).astype(mm_dtype)
        kernel = functools.partial(_phase12_kernel, c_dim=c_dim, use_bf16=use_bf16)
        h2_p, h3_p = pl.pallas_call(
            kernel,
            grid=grid,
            in_specs=[points_spec, planes_spec, convex_spec],
            out_specs=(h2_spec, h3_spec),
            out_shape=out_shape,
            compiler_params=cparams,
        )(points_p, planes_p, convex_p)
    else:
        raise ValueError(f"unsupported phase {phase}")

    h2 = h2_p[:, :N, :c_dim]
    h3 = h3_p[:, :N, :]
    return h2, h3


if __name__ == "__main__":
    B, N, p_dim, c_dim = 2, 256, 32, 16

    key = jax.random.PRNGKey(0)
    k_pts, k_pl, k_cv, k_cc = jax.random.split(key, 4)
    points = jax.random.normal(k_pts, (B, N, 3), jnp.float32)
    planes = 0.1 * jax.random.normal(k_pl, (B, 4, p_dim), jnp.float32)
    # same init as the PyTorch module
    convex_w = 0.02 * jax.random.normal(k_cv, (p_dim, c_dim), jnp.float32)
    concave_w = 1e-5 + 0.02 * jax.random.normal(k_cc, (c_dim, 1), jnp.float32)

    fwd = jax.jit(generator_forward, static_argnames=("phase", "tn", "use_bf16"))

    # ---- phase 0 ----
    h2, h3 = fwd(points, planes, convex_w, concave_w, phase=0)
    jax.block_until_ready((h2, h3))
    assert h2.shape == (B, N, c_dim) and h3.shape == (B, N, 1)

    pts4 = jnp.concatenate([points, jnp.ones((B, N, 1), jnp.float32)], axis=-1)
    h1_ref = jnp.maximum(jnp.einsum("bnk,bkp->bnp", pts4, planes), 0.0)
    h2_ref = jnp.clip(1.0 - jnp.einsum("bnp,pc->bnc", h1_ref, convex_w), 0.0, 1.0)
    h3_ref = jnp.clip(jnp.einsum("bnc,co->bno", h2_ref, concave_w), 0.0, 1.0)
    np.testing.assert_allclose(np.asarray(h2), np.asarray(h2_ref), atol=1e-4, rtol=1e-4)
    np.testing.assert_allclose(np.asarray(h3), np.asarray(h3_ref), atol=1e-4, rtol=1e-4)

    # ---- phase 1 / 2 (binarized convex weights + min over convexes) ----
    h2b, h3b = fwd(points, planes, convex_w, concave_w, phase=1)
    jax.block_until_ready((h2b, h3b))
    h2b_ref = jnp.einsum("bnp,pc->bnc", h1_ref, (convex_w > 0.01).astype(jnp.float32))
    h3b_ref = jnp.min(h2b_ref, axis=2, keepdims=True)
    np.testing.assert_allclose(np.asarray(h2b), np.asarray(h2b_ref), atol=1e-3, rtol=1e-3)
    np.testing.assert_allclose(np.asarray(h3b), np.asarray(h3b_ref), atol=1e-3, rtol=1e-3)

    print("KERNEL_OK")
</pallas_src>

<mosaic_0001>
module attributes {stable_mosaic.version = 11 : i64} {
  func.func @_phase0_kernel(%arg0: i32, %arg1: i32, %arg2: memref<1x256x4xf32, #tpu.memory_space<vmem>>, %arg3: memref<1x4x128xf32, #tpu.memory_space<vmem>>, %arg4: memref<128x128xf32, #tpu.memory_space<vmem>>, %arg5: memref<1x128xf32, #tpu.memory_space<vmem>>, %arg6: memref<1x256x128xf32, #tpu.memory_space<vmem>>, %arg7: memref<1x256x1xf32, #tpu.memory_space<vmem>>) attributes {dimension_semantics = [#tpu.dimension_semantics<parallel>, #tpu.dimension_semantics<parallel>], iteration_bounds = array<i64: 2, 1>, scalar_prefetch = 0 : i64, scratch_operands = 0 : i64, tpu.core_type = #tpu.core_type<tc>, window_params = [{transform_indices = @transform_0, window_bounds = array<i64: 1, 256, 4>}, {transform_indices = @transform_1, window_bounds = array<i64: 1, 4, 128>}, {pipeline_mode = #tpu.pipeline_mode<synchronous>, transform_indices = @transform_2, window_bounds = array<i64: 128, 128>}, {pipeline_mode = #tpu.pipeline_mode<synchronous>, transform_indices = @transform_3, window_bounds = array<i64: 1, 128>}, {transform_indices = @transform_4, window_bounds = array<i64: 1, 256, 128>}, {transform_indices = @transform_5, window_bounds = array<i64: 1, 256, 1>}]} {
    %c0 = arith.constant 0 : index
    %c0_0 = arith.constant 0 : index
    %c0_1 = arith.constant 0 : index
    %0 = vector.load %arg2[%c0, %c0_0, %c0_1] : memref<1x256x4xf32, #tpu.memory_space<vmem>>, vector<1x256x4xf32>
    %1 = vector.shape_cast %0 : vector<1x256x4xf32> to vector<256x4xf32>
    %c0_2 = arith.constant 0 : index
    %c0_3 = arith.constant 0 : index
    %c0_4 = arith.constant 0 : index
    %2 = vector.load %arg3[%c0_2, %c0_3, %c0_4] : memref<1x4x128xf32, #tpu.memory_space<vmem>>, vector<1x4x128xf32>
    %3 = vector.shape_cast %2 : vector<1x4x128xf32> to vector<4x128xf32>
    %cst = arith.constant dense<0.000000e+00> : vector<256x128xf32>
    %4 = tpu.matmul %1, %3, %cst {dimension_numbers = #tpu.dot_dimension_numbers<[1], [0], [0], [1], [0, 0, 1, 1], [], []>} : vector<256x4xf32>, vector<4x128xf32>, vector<256x128xf32> -> vector<256x128xf32>
    %cst_5 = arith.constant 0.000000e+00 : f32
    %5 = vector.broadcast %cst_5 : f32 to vector<256x128xf32>
    %6 = arith.maximumf %4, %5 : vector<256x128xf32>
    %c0_6 = arith.constant 0 : index
    %c0_7 = arith.constant 0 : index
    %7 = vector.load %arg4[%c0_6, %c0_7] : memref<128x128xf32, #tpu.memory_space<vmem>>, vector<128x128xf32>
    %cst_8 = arith.constant dense<0.000000e+00> : vector<256x128xf32>
    %8 = tpu.matmul %6, %7, %cst_8 {dimension_numbers = #tpu.dot_dimension_numbers<[1], [0], [0], [1], [0, 0, 1, 1], [], []>} : vector<256x128xf32>, vector<128x128xf32>, vector<256x128xf32> -> vector<256x128xf32>
    %cst_9 = arith.constant 1.000000e+00 : f32
    %9 = vector.broadcast %cst_9 : f32 to vector<256x128xf32>
    %10 = arith.subf %9, %8 : vector<256x128xf32>
    %cst_10 = arith.constant 0.000000e+00 : f32
    %cst_11 = arith.constant 1.000000e+00 : f32
    %11 = vector.broadcast %cst_10 : f32 to vector<256x128xf32>
    %12 = arith.maximumf %11, %10 : vector<256x128xf32>
    %13 = vector.broadcast %cst_11 : f32 to vector<256x128xf32>
    %14 = arith.minimumf %13, %12 : vector<256x128xf32>
    %c0_12 = arith.constant 0 : index
    %c0_13 = arith.constant 0 : index
    %c0_14 = arith.constant 0 : index
    %15 = vector.load %arg6[%c0_12, %c0_13, %c0_14] : memref<1x256x128xf32, #tpu.memory_space<vmem>>, vector<1x256x128xf32>
    %16 = vector.shape_cast %15 : vector<1x256x128xf32> to vector<256x128xf32>
    %17 = vector.shape_cast %14 : vector<256x128xf32> to vector<1x256x128xf32>
    tpu.vector_store %arg6[%c0_12, %c0_13, %c0_14], %17 {strides = array<i32>} : memref<1x256x128xf32, #tpu.memory_space<vmem>>, vector<1x256x128xf32>,
    %c0_15 = arith.constant 0 : index
    %c0_16 = arith.constant 0 : index
    %18 = vector.load %arg5[%c0_15, %c0_16] : memref<1x128xf32, #tpu.memory_space<vmem>>, vector<1x128xf32>
    %19 = vector.broadcast %18 : vector<1x128xf32> to vector<256x128xf32>
    %20 = arith.mulf %14, %19 : vector<256x128xf32>
    %cst_17 = arith.constant dense<0.000000e+00> : vector<256xf32>
    %21 = vector.multi_reduction <add>, %20, %cst_17 [1] : vector<256x128xf32> to vector<256xf32>
    %22 = vector.shape_cast %21 : vector<256xf32> to vector<256x1xf32>
    %cst_18 = arith.constant 0.000000e+00 : f32
    %cst_19 = arith.constant 1.000000e+00 : f32
    %23 = vector.broadcast %cst_18 : f32 to vector<256x1xf32>
    %24 = arith.maximumf %23, %22 : vector<256x1xf32>
    %25 = vector.broadcast %cst_19 : f32 to vector<256x1xf32>
    %26 = arith.minimumf %25, %24 : vector<256x1xf32>
    %c0_20 = arith.constant 0 : index
    %c0_21 = arith.constant 0 : index
    %c0_22 = arith.constant 0 : index
    %27 = vector.load %arg7[%c0_20, %c0_21, %c0_22] : memref<1x256x1xf32, #tpu.memory_space<vmem>>, vector<1x256x1xf32>
    %28 = vector.shape_cast %27 : vector<1x256x1xf32> to vector<256x1xf32>
    %29 = vector.shape_cast %26 : vector<256x1xf32> to vector<1x256x1xf32>
    tpu.vector_store %arg7[%c0_20, %c0_21, %c0_22], %29 {strides = array<i32>} : memref<1x256x1xf32, #tpu.memory_space<vmem>>, vector<1x256x1xf32>,
    return
  }
  func.func @transform_0(%arg0: i32, %arg1: i32) -> (i32, i32, i32) {
    %c0_i32 = arith.constant 0 : i32
    %c0_i32_0 = arith.constant 0 : i32
    return %arg0, %arg1, %c0_i32 : i32, i32, i32
  }
  func.func @transform_1(%arg0: i32, %arg1: i32) -> (i32, i32, i32) {
    %c0_i32 = arith.constant 0 : i32
    %c0_i32_0 = arith.constant 0 : i32
    %c0_i32_1 = arith.constant 0 : i32
    return %arg0, %c0_i32, %c0_i32_0 : i32, i32, i32
  }
  func.func @transform_2(%arg0: i32, %arg1: i32) -> (i32, i32) {
    %c0_i32 = arith.constant 0 : i32
    %c0_i32_0 = arith.constant 0 : i32
    %c0_i32_1 = arith.constant 0 : i32
    return %c0_i32, %c0_i32_0 : i32, i32
  }
  func.func @transform_3(%arg0: i32, %arg1: i32) -> (i32, i32) {
    %c0_i32 = arith.constant 0 : i32
    %c0_i32_0 = arith.constant 0 : i32
    %c0_i32_1 = arith.constant 0 : i32
    return %c0_i32, %c0_i32_0 : i32, i32
  }
  func.func @transform_4(%arg0: i32, %arg1: i32) -> (i32, i32, i32) {
    %c0_i32 = arith.constant 0 : i32
    %c0_i32_0 = arith.constant 0 : i32
    return %arg0, %arg1, %c0_i32 : i32, i32, i32
  }
  func.func @transform_5(%arg0: i32, %arg1: i32) -> (i32, i32, i32) {
    %c0_i32 = arith.constant 0 : i32
    %c0_i32_0 = arith.constant 0 : i32
    return %arg0, %arg1, %c0_i32 : i32, i32, i32
  }
}

</mosaic_0001>

<llo_original>
// kernel: generator_forward.1
$region0: #{generator_forward.1}
  #allocation0 [shape = 'u32[]', space=smem, size = 0x4, offset = 0x4, fixed_abs, tag = 'smem constant byte address 0x4 - core index']
  #allocation1 [shape = 'u32[144,128]{1,0:T(1,128)}', space=vmem, size = 0x12000, scoped, tag = 'internal scratch']
  %s0 = inlined_call_operand.vmem [shape: f32[2,256,4], index: 0, kind: input, shape index: {}]
  %s1 = inlined_call_operand.vmem [shape: f32[2,4,128], index: 1, kind: input, shape index: {}]
  %s2 = inlined_call_operand.vmem [shape: f32[128,128], index: 2, kind: input, shape index: {}]
  %s3 = inlined_call_operand.vmem [shape: f32[1,128], index: 3, kind: input, shape index: {}]
  %s4 = inlined_call_operand.vmem [shape: f32[2,256,128], index: 4, kind: output, shape index: {0}]
  %s5 = inlined_call_operand.vmem [shape: f32[2,256,1], index: 5, kind: output, shape index: {1}]
  %6 = xla_tuple %s4, %s5
  %s7 = sld [smem:[#allocation0]]
  $region57: #{generator_forward.1} parent=0
    _
  %s9 = ssub.s32 1, %s7
  %s10 = scalar_select 0, %s9, %s7
  loop: start=0, step=1, limit=4
  $region2: #{generator_forward.1} parent=0 // loop_pre_header
    _
  $region3: #{generator_forward.1} parent=0 // loop_header
    %s12 = sphi 0, %s16
    %p13 = scmp.ge.s32.totalorder %s12, 4
    %s19 = sphi 0, %s31
    %s20 = sphi 0, %s27
    %s21 = sphi 0, %s19
    %s22 = sphi 0, %s20
    %s23 = sphi 0, %s21
    %s24 = sphi 0, %s22
    %s36 = sphi 0, %s38
    %s39 = sphi 0, %s36
    %s40 = sphi 0, %s39
    %s56 = sphi 0, %s40
    %s62 = sphi 0, %s64
    %s65 = sphi 0, %s62
    %s66 = sphi 0, %s65
    %s82 = sphi 0, %s66
    %s86 = sphi 0, %s86
    %s88 = sphi 0, %s86
    %s89 = sphi 0, %s88
    %s103 = sphi 0, %s89
    %s107 = sphi 0, %s107
    %s109 = sphi 0, %s107
    %s110 = sphi 0, %s109
    %s124 = sphi 0, %s110
    %s132 = sphi 0, %s134
    %s135 = sphi 0, %s132
    %s136 = sphi 0, %s135
    %s152 = sphi 0, %s136
    %s160 = sphi 0, %s162
    %s163 = sphi 0, %s160
    %s164 = sphi 0, %s163
    %s180 = sphi 0, %s164
  $region4: #{generator_forward.1} parent=0 // loop_header_branch
    %15 = sbr.rel (%p13) target = $region8
  $region5: #{generator_forward.1} parent=0 // loop_body
    %s17 = ssub.s32 %s12, 1
    %s18 = ssub.s32 %s12, 2
    %s25 = sadd.s32 1, %s20
    %p26 = scmp.ge.s32.totalorder %s25, 1
    %s27 = scalar_select %p26, 0, %s25
    %s28 = sadd.s32 1, %s19
    %s29 = scalar_select %p26, %s28, %s19
    %p30 = scmp.ge.s32.totalorder %s29, 2
    %s31 = scalar_select %p30, 0, %s29
    %s32 = ssub.s32 %s19, %s31
    %s33 = ssub.s32 %s20, %s27
    %s34 = sor.u32 %s32, %s33
    %p35 = scmp.eq.s32.totalorder %s34, 0
    %s37 = sadd.s32 %s36, 1
    %s38 = scalar_select %p35, %s36, %s37
    %p41 = pneg %p35
    %p42 = scmp.eq.s32.totalorder %s12, 1
    %p43 = por %p41, %p42
    %p44 = scmp.ne.s32.totalorder %s36, %s39
    %p45 = scmp.eq.s32.totalorder %s12, 0
    %p46 = por %p44, %p45
    %p47 = scmp.ne.s32.totalorder %s36, %s39
    %p48 = scmp.eq.s32.totalorder %s17, 1
    %p49 = por %p47, %p48
    %p50 = scmp.ne.s32.totalorder %s39, %s40
    %p51 = scmp.eq.s32.totalorder %s17, 0
    %p52 = por %p50, %p51
    %p53 = scmp.ne.s32.totalorder %s39, %s40
    %p54 = scmp.eq.s32.totalorder %s18, 1
    %p55 = por %p53, %p54
    %p57 = scmp.ne.s32.totalorder %s40, %s56
    %p58 = scmp.eq.s32.totalorder %s18, 0
    %p59 = por %p57, %p58
    %s60 = ssub.s32 %s19, %s31
    %p61 = scmp.eq.s32.totalorder %s60, 0
    %s63 = sadd.s32 %s62, 1
    %s64 = scalar_select %p61, %s62, %s63
    %p67 = pneg %p61
    %p68 = scmp.eq.s32.totalorder %s12, 1
    %p69 = por %p67, %p68
    %p70 = scmp.ne.s32.totalorder %s62, %s65
    %p71 = scmp.eq.s32.totalorder %s12, 0
    %p72 = por %p70, %p71
    %p73 = scmp.ne.s32.totalorder %s62, %s65
    %p74 = scmp.eq.s32.totalorder %s17, 1
    %p75 = por %p73, %p74
    %p76 = scmp.ne.s32.totalorder %s65, %s66
    %p77 = scmp.eq.s32.totalorder %s17, 0
    %p78 = por %p76, %p77
    %p79 = scmp.ne.s32.totalorder %s65, %s66
    %p80 = scmp.eq.s32.totalorder %s18, 1
    %p81 = por %p79, %p80
    %p83 = scmp.ne.s32.totalorder %s66, %s82
    %p84 = scmp.eq.s32.totalorder %s18, 0
    %p85 = por %p83, %p84
    %s87 = sadd.s32 %s86, 1
    %p90 = scmp.eq.s32.totalorder %s12, 1
    %p91 = scmp.ne.s32.totalorder %s86, %s88
    %p92 = scmp.eq.s32.totalorder %s12, 0
    %p93 = por %p91, %p92
    %p94 = scmp.ne.s32.totalorder %s86, %s88
    %p95 = scmp.eq.s32.totalorder %s17, 1
    %p96 = por %p94, %p95
    %p97 = scmp.ne.s32.totalorder %s88, %s89
    %p98 = scmp.eq.s32.totalorder %s17, 0
    %p99 = por %p97, %p98
    %p100 = scmp.ne.s32.totalorder %s88, %s89
    %p101 = scmp.eq.s32.totalorder %s18, 1
    %p102 = por %p100, %p101
    %p104 = scmp.ne.s32.totalorder %s89, %s103
    %p105 = scmp.eq.s32.totalorder %s18, 0
    %p106 = por %p104, %p105
    %s108 = sadd.s32 %s107, 1
    %p111 = scmp.eq.s32.totalorder %s12, 1
    %p112 = scmp.ne.s32.totalorder %s107, %s109
    %p113 = scmp.eq.s32.totalorder %s12, 0
    %p114 = por %p112, %p113
    %p115 = scmp.ne.s32.totalorder %s107, %s109
    %p116 = scmp.eq.s32.totalorder %s17, 1
    %p117 = por %p115, %p116
    %p118 = scmp.ne.s32.totalorder %s109, %s110
    %p119 = scmp.eq.s32.totalorder %s17, 0
    %p120 = por %p118, %p119
    %p121 = scmp.ne.s32.totalorder %s109, %s110
    %p122 = scmp.eq.s32.totalorder %s18, 1
    %p123 = por %p121, %p122
    %p125 = scmp.ne.s32.totalorder %s110, %s124
    %p126 = scmp.eq.s32.totalorder %s18, 0
    %p127 = por %p125, %p126
    %s128 = ssub.s32 %s19, %s31
    %s129 = ssub.s32 %s20, %s27
    %s130 = sor.u32 %s128, %s129
    %p131 = scmp.eq.s32.totalorder %s130, 0
    %s133 = sadd.s32 %s132, 1
    %s134 = scalar_select %p131, %s132, %s133
    %p137 = pneg %p131
    %p138 = scmp.eq.s32.totalorder %s12, 1
    %p139 = por %p137, %p138
    %p140 = scmp.ne.s32.totalorder %s132, %s135
    %p141 = scmp.eq.s32.totalorder %s12, 0
    %p142 = por %p140, %p141
    %p143 = scmp.ne.s32.totalorder %s132, %s135
    %p144 = scmp.eq.s32.totalorder %s17, 1
    %p145 = por %p143, %p144
    %p146 = scmp.ne.s32.totalorder %s135, %s136
    %p147 = scmp.eq.s32.totalorder %s17, 0
    %p148 = por %p146, %p147
    %p149 = scmp.ne.s32.totalorder %s135, %s136
    %p150 = scmp.eq.s32.totalorder %s18, 1
    %p151 = por %p149, %p150
    %p153 = scmp.ne.s32.totalorder %s136, %s152
    %p154 = scmp.eq.s32.totalorder %s18, 0
    %p155 = por %p153, %p154
    %s156 = ssub.s32 %s19, %s31
    %s157 = ssub.s32 %s20, %s27
    %s158 = sor.u32 %s156, %s157
    %p159 = scmp.eq.s32.totalorder %s158, 0
    %s161 = sadd.s32 %s160, 1
    %s162 = scalar_select %p159, %s160, %s161
    %p165 = pneg %p159
    %p166 = scmp.eq.s32.totalorder %s12, 1
    %p167 = por %p165, %p166
    %p168 = scmp.ne.s32.totalorder %s160, %s163
    %p169 = scmp.eq.s32.totalorder %s12, 0
    %p170 = por %p168, %p169
    %p171 = scmp.ne.s32.totalorder %s160, %s163
    %p172 = scmp.eq.s32.totalorder %s17, 1
    %p173 = por %p171, %p172
    %p174 = scmp.ne.s32.totalorder %s163, %s164
    %p175 = scmp.eq.s32.totalorder %s17, 0
    %p176 = por %p174, %p175
    %p177 = scmp.ne.s32.totalorder %s163, %s164
    %p178 = scmp.eq.s32.totalorder %s18, 1
    %p179 = por %p177, %p178
    %p181 = scmp.ne.s32.totalorder %s164, %s180
    %p182 = scmp.eq.s32.totalorder %s18, 0
    %p183 = por %p181, %p182
    %p184 = scmp.le.s32.totalorder 1, %s12
    %p185 = scmp.lt.s32.totalorder %s12, 3
    %p186 = pnand %p184, %p185
    %p187 = pneg %p186
    // Predicated region
    $region9: #{generator_forward.1} parent=5 // pred_check
      _
    $region10: #{generator_forward.1} parent=5 // pred_check_branch
      %189 = sbr.rel (%p186) target = $region12
    $region11: #{generator_forward.1} parent=5 // pred_region
      %s190 = ssub.s32 %s12, 1
      // Predicated region
      $region13: #{generator_forward.1} parent=11 // pred_check
        %p191 = pneg %p99
      $region14: #{generator_forward.1} parent=11 // pred_check_branch
        %193 = sbr.rel (%p191) target = $region16
      $region15: #{generator_forward.1} parent=11 // pred_region
        _
      $region16: #{generator_forward.1} parent=11 // pred_fallthru
        _
      // Predicated region
      $region17: #{generator_forward.1} parent=11 // pred_check
        %p194 = pneg %p120
      $region18: #{generator_forward.1} parent=11 // pred_check_branch
        %196 = sbr.rel (%p194) target = $region20
      $region19: #{generator_forward.1} parent=11 // pred_region
        _
      $region20: #{generator_forward.1} parent=11 // pred_fallthru
        _
    $region12: #{generator_forward.1} parent=5 // pred_fallthru
      _
    %p197 = scmp.lt.s32.totalorder %s12, 2
    // Predicated region
    $region21: #{generator_forward.1} parent=5 // pred_check
      %p198 = pneg %p197
    $region22: #{generator_forward.1} parent=5 // pred_check_branch
      %200 = sbr.rel (%p198) target = $region24
    $region23: #{generator_forward.1} parent=5 // pred_region
      // Predicated region
      $region25: #{generator_forward.1} parent=23 // pred_check
        %p201 = pneg %p46
      $region26: #{generator_forward.1} parent=23 // pred_check_branch
        %203 = sbr.rel (%p201) target = $region28
      $region27: #{generator_forward.1} parent=23 // pred_region
        %s204 = smul.u32 32, %s20
        %p205 = scmp.lt.s32.totalorder %s19, 1
        %s206 = scalar_select %p205, %s19, 1
        %p207 = scmp.lt.s32.totalorder %s204, 31
        %s208 = scalar_select %p207, %s204, 31
        %s209 = smul.addr %s206, 32
        %s210 = sadd.s32 %s208, %s209
        %s211 = smul.addr %s210, 8
        %s212 = scalar_lea.vmem %s0, %s211
        %s213 = smul.u32 32, %s20
      $region28: #{generator_forward.1} parent=23 // pred_fallthru
        _
      // Predicated region
      $region29: #{generator_forward.1} parent=23 // pred_check
        %p214 = pneg %p72
      $region30: #{generator_forward.1} parent=23 // pred_check_branch
        %216 = sbr.rel (%p214) target = $region32
      $region31: #{generator_forward.1} parent=23 // pred_region
        %p217 = scmp.lt.s32.totalorder %s19, 1
        %s218 = scalar_select %p217, %s19, 1
        %s219 = smul.addr %s218, 4
        %s220 = scalar_lea.vmem %s1, %s219
      $region32: #{generator_forward.1} parent=23 // pred_fallthru
        _
    $region24: #{generator_forward.1} parent=5 // pred_fallthru
      _
    %p221 = scmp.le.s32.totalorder 1, %s12
    %p222 = scmp.lt.s32.totalorder %s12, 3
    %p223 = pnand %p221, %p222
    %p224 = pneg %p223
    // Predicated region
    $region33: #{generator_forward.1} parent=5 // pred_check
      _
    $region34: #{generator_forward.1} parent=5 // pred_check_branch
      %226 = sbr.rel (%p223) target = $region36
    $region35: #{generator_forward.1} parent=5 // pred_region
      %s227 = ssub.s32 %s12, 1
      %s228 = smul.u32 32, %s22
      %p229 = scmp.lt.s32.totalorder %s21, 1
      %s230 = scalar_select %p229, %s21, 1
      %p231 = scmp.lt.s32.totalorder %s228, 31
      %s232 = scalar_select %p231, %s228, 31
      %s233 = smul.addr %s230, 32
      %s234 = sadd.s32 %s232, %s233
      %s235 = smul.addr %s234, 8
      %s236 = scalar_lea.vmem %s0, %s235
      %p237 = pneg %p52
      %p238 = pneg %p49
      %p239 = scmp.lt.s32.totalorder %s21, 1
      %s240 = scalar_select %p239, %s21, 1
      %s241 = smul.addr %s240, 4
      %s242 = scalar_lea.vmem %s1, %s241
      %p243 = pneg %p78
      %p244 = pneg %p75
      %p245 = pneg %p99
      %p246 = pneg %p96
      %p247 = pneg %p120
      %p248 = pneg %p117
      %p249 = pneg %p148
      %p250 = pneg %p145
      %s251 = smul.u32 32, %s22
      %p252 = scmp.lt.s32.totalorder %s21, 1
      %s253 = scalar_select %p252, %s21, 1
      %p254 = scmp.lt.s32.totalorder %s251, 31
      %s255 = scalar_select %p254, %s251, 31
      %s256 = smul.addr %s253, 32
      %s257 = sadd.s32 %s255, %s256
      %s258 = smul.addr %s257, 8
      %s259 = scalar_lea.vmem %s4, %s258
      %p260 = pneg %p176
      %p261 = pneg %p173
      %s262 = smul.u32 32, %s22
      %p263 = scmp.lt.s32.totalorder %s21, 1
      %s264 = scalar_select %p263, %s21, 1
      %p265 = scmp.lt.s32.totalorder %s262, 31
      %s266 = scalar_select %p265, %s262, 31
      %s267 = smul.addr %s264, 32
      %s268 = sadd.s32 %s266, %s267
      %s269 = smul.addr %s268, 8
      %s270 = scalar_lea.vmem %s5, %s269
      %s271 = smul.u32 32, %s22
      %p272 = scmp.lt.s32.totalorder %s21, 1
      %s273 = scalar_select %p272, %s21, 1
      %p274 = scmp.lt.s32.totalorder %s271, 31
      %s275 = scalar_select %p274, %s271, 31
      %s276 = smul.addr %s273, 32
      %s277 = sadd.s32 %s275, %s276
      %s278 = smul.addr %s277, 8
      %s279 = scalar_lea.vmem %s0, %s278
      %s280 = smul.u32 32, %s22
      %p281 = scmp.lt.s32.totalorder %s21, 1
      %s282 = scalar_select %p281, %s21, 1
      %s283 = smul.addr %s282, 4
      %s284 = scalar_lea.vmem %s1, %s283
      %s285 = smul.u32 32, %s22
      %p286 = scmp.lt.s32.totalorder %s21, 1
      %s287 = scalar_select %p286, %s21, 1
      %p288 = scmp.lt.s32.totalorder %s285, 31
      %s289 = scalar_select %p288, %s285, 31
      %s290 = smul.addr %s287, 32
      %s291 = sadd.s32 %s289, %s290
      %s292 = smul.addr %s291, 8
      %s293 = scalar_lea.vmem %s4, %s292
      %s294 = smul.u32 32, %s22
      %s295 = smul.u32 32, %s22
      %p296 = scmp.lt.s32.totalorder %s21, 1
      %s297 = scalar_select %p296, %s21, 1
      %p298 = scmp.lt.s32.totalorder %s295, 31
      %s299 = scalar_select %p298, %s295, 31
      %s300 = smul.addr %s297, 32
      %s301 = sadd.s32 %s299, %s300
      %s302 = smul.addr %s301, 8
      %s303 = scalar_lea.vmem %s5, %s302
      %s304 = smul.u32 32, %s22
      %v305 = vld [vmem:[%s279] sm:$0xff]
      %v306 = vld [vmem:[%s279 + $0x8] sm:$0xff]
      %v307 = vld [vmem:[%s279 + $0x10] sm:$0xff]
      %v308 = vld [vmem:[%s279 + $0x18] sm:$0xff]
      %v309 = vld [vmem:[%s279 + $0x20] sm:$0xff]
      %v310 = vld [vmem:[%s279 + $0x28] sm:$0xff]
      %v311 = vld [vmem:[%s279 + $0x30] sm:$0xff]
      %v312 = vld [vmem:[%s279 + $0x38] sm:$0xff]
      %v313 = vld [vmem:[%s279 + $0x40] sm:$0xff]
      %v314 = vld [vmem:[%s279 + $0x48] sm:$0xff]
      %v315 = vld [vmem:[%s279 + $0x50] sm:$0xff]
      %v316 = vld [vmem:[%s279 + $0x58] sm:$0xff]
      %v317 = vld [vmem:[%s279 + $0x60] sm:$0xff]
      %v318 = vld [vmem:[%s279 + $0x68] sm:$0xff]
      %v319 = vld [vmem:[%s279 + $0x70] sm:$0xff]
      %v320 = vld [vmem:[%s279 + $0x78] sm:$0xff]
      %v321 = vld [vmem:[%s279 + $0x80] sm:$0xff]
      %v322 = vld [vmem:[%s279 + $0x88] sm:$0xff]
      %v323 = vld [vmem:[%s279 + $0x90] sm:$0xff]
      %v324 = vld [vmem:[%s279 + $0x98] sm:$0xff]
      %v325 = vld [vmem:[%s279 + $0xa0] sm:$0xff]
      %v326 = vld [vmem:[%s279 + $0xa8] sm:$0xff]
      %v327 = vld [vmem:[%s279 + $0xb0] sm:$0xff]
      %v328 = vld [vmem:[%s279 + $0xb8] sm:$0xff]
      %v329 = vld [vmem:[%s279 + $0xc0] sm:$0xff]
      %v330 = vld [vmem:[%s279 + $0xc8] sm:$0xff]
      %v331 = vld [vmem:[%s279 + $0xd0] sm:$0xff]
      %v332 = vld [vmem:[%s279 + $0xd8] sm:$0xff]
      %v333 = vld [vmem:[%s279 + $0xe0] sm:$0xff]
      %v334 = vld [vmem:[%s279 + $0xe8] sm:$0xff]
      %v335 = vld [vmem:[%s279 + $0xf0] sm:$0xff]
      %v336 = vld [vmem:[%s279 + $0xf8] sm:$0xff]
      %v337 = vld [vmem:[%s284] sm:$0xf]
      %vm338 = vcmask 31744
      %v340 = vsel %vm338, %v305, 0
      %v343 = vsel %vm338, %v306, 0
      %v346 = vsel %vm338, %v307, 0
      %v349 = vsel %vm338, %v308, 0
      %v352 = vsel %vm338, %v309, 0
      %v355 = vsel %vm338, %v310, 0
      %v358 = vsel %vm338, %v311, 0
      %v361 = vsel %vm338, %v312, 0
      %v364 = vsel %vm338, %v313, 0
      %v367 = vsel %vm338, %v314, 0
      %v370 = vsel %vm338, %v315, 0
      %v373 = vsel %vm338, %v316, 0
      %v376 = vsel %vm338, %v317, 0
      %v379 = vsel %vm338, %v318, 0
      %v382 = vsel %vm338, %v319, 0
      %v385 = vsel %vm338, %v320, 0
      %v388 = vsel %vm338, %v321, 0
      %v391 = vsel %vm338, %v322, 0
      %v394 = vsel %vm338, %v323, 0
      %v397 = vsel %vm338, %v324, 0
      %v400 = vsel %vm338, %v325, 0
      %v403 = vsel %vm338, %v326, 0
      %v406 = vsel %vm338, %v327, 0
      %v409 = vsel %vm338, %v328, 0
      %v412 = vsel %vm338, %v329, 0
      %v415 = vsel %vm338, %v330, 0
      %v418 = vsel %vm338, %v331, 0
      %v421 = vsel %vm338, %v332, 0
      %v424 = vsel %vm338, %v333, 0
      %v427 = vsel %vm338, %v334, 0
      %v430 = vsel %vm338, %v335, 0
      %v433 = vsel %vm338, %v336, 0
      %vm435 = vcmask 1043456
      %v437 = vsel %vm435, %v337, 0
      %439 = vmatprep.subr.mxu0 0.0
      %440 = vmatpush1.msra.mxu0 0.0
      %441 = vmatprep.subr.mxu0 0.0
      %442 = vmatpush1.msra.mxu0 0.0
      %443 = vmatprep.subr.mxu0 0.0
      %444 = vmatpush1.msra.mxu0 0.0
      %445 = vmatprep.subr.mxu0 0.0
      %446 = vmatpush1.msra.mxu0 0.0
      %447 = vmatprep.subr.mxu0 0.0
      %448 = vmatpush1.msra.mxu0 0.0
      %449 = vmatprep.subr.mxu0 0.0
      %450 = vmatpush1.msra.mxu0 0.0
      %451 = vmatprep.subr.mxu0 0.0
      %452 = vmatpush1.msra.mxu0 0.0
      %453 = vmatprep.subr.mxu0 0.0
      %454 = vmatpush1.msra.mxu0 0.0
      %455 = vmatprep.subr.mxu0 0.0
      %456 = vmatpush1.msra.mxu0 0.0
      %457 = vmatprep.subr.mxu0 0.0
      %458 = vmatpush1.msra.mxu0 0.0
      %459 = vmatprep.subr.mxu0 0.0
      %460 = vmatpush1.msra.mxu0 0.0
      %461 = vmatprep.subr.mxu0 0.0
      %462 = vmatpush1.msra.mxu0 0.0
      %463 = vmatprep.subr.mxu0 0.0
      %464 = vmatpush1.msra.mxu0 0.0
      %465 = vmatprep.subr.mxu0 0.0
      %466 = vmatpush1.msra.mxu0 0.0
      %467 = vmatprep.subr.mxu0 0.0
      %468 = vmatpush1.msra.mxu0 0.0
      %469 = vmatprep.subr.mxu0 0.0
      %470 = vmatpush1.msra.mxu0 %v437
      %471 = vmatprep.subr.mxu0 0.0
      %472 = vmatpush2.msra.mxu0 0.0
      %473 = vmatprep.subr.mxu0 0.0
      %474 = vmatpush2.msra.mxu0 0.0
      %475 = vmatprep.subr.mxu0 0.0
      %476 = vmatpush2.msra.mxu0 0.0
      %477 = vmatprep.subr.mxu0 0.0
      %478 = vmatpush2.msra.mxu0 0.0
      %479 = vmatprep.subr.mxu0 0.0
      %480 = vmatpush2.msra.mxu0 0.0
      %481 = vmatprep.subr.mxu0 0.0
      %482 = vmatpush2.msra.mxu0 0.0
      %483 = vmatprep.subr.mxu0 0.0
      %484 = vmatpush2.msra.mxu0 0.0
      %485 = vmatprep.subr.mxu0 0.0
      %486 = vmatpush2.msra.mxu0 0.0
      %487 = vmatprep.subr.mxu0 0.0
      %488 = vmatpush2.msra.mxu0 0.0
      %489 = vmatprep.subr.mxu0 0.0
      %490 = vmatpush2.msra.mxu0 0.0
      %491 = vmatprep.subr.mxu0 0.0
      %492 = vmatpush2.msra.mxu0 0.0
      %493 = vmatprep.subr.mxu0 0.0
      %494 = vmatpush2.msra.mxu0 0.0
      %495 = vmatprep.subr.mxu0 0.0
      %496 = vmatpush2.msra.mxu0 0.0
      %497 = vmatprep.subr.mxu0 0.0
      %498 = vmatpush2.msra.mxu0 0.0
      %499 = vmatprep.subr.mxu0 0.0
      %500 = vmatpush2.msra.mxu0 0.0
      %501 = vmatprep.subr.mxu0 0.0
      %502 = vmatpush2.msra.mxu0 0.0
      %503 = vmatprep.mubr.f32.mxu0 0.0
      %504 = vmatmul.mubr.f32.gmra.mxu0 %v340
      %v505 = vpop.f32.mrf.mxu0
      %v506 = vadd.f32 0.0, %v505
      %v507 = vpop.f32.mrf.mxu0
      %508 = vmatprep.mubr.f32.mxu0 0.0
      %509 = vmatmul.mubr.f32.gmra.mxu0 %v343
      %v510 = vpop.f32.mrf.mxu0
      %v511 = vadd.f32 0.0, %v510
      %v512 = vpop.f32.mrf.mxu0
      %513 = vmatprep.mubr.f32.mxu0 0.0
      %514 = vmatmul.mubr.f32.gmra.mxu0 %v346
      %v515 = vpop.f32.mrf.mxu0
      %v516 = vadd.f32 0.0, %v515
      %v517 = vpop.f32.mrf.mxu0
      %518 = vmatprep.mubr.f32.mxu0 0.0
      %519 = vmatmul.mubr.f32.gmra.mxu0 %v349
      %v520 = vpop.f32.mrf.mxu0
      %v521 = vadd.f32 0.0, %v520
      %v522 = vpop.f32.mrf.mxu0
      %523 = vmatprep.mubr.f32.mxu0 0.0
      %524 = vmatmul.mubr.f32.gmra.mxu0 %v352
      %v525 = vpop.f32.mrf.mxu0
      %v526 = vadd.f32 0.0, %v525
      %v527 = vpop.f32.mrf.mxu0
      %528 = vmatprep.mubr.f32.mxu0 0.0
      %529 = vmatmul.mubr.f32.gmra.mxu0 %v355
      %v530 = vpop.f32.mrf.mxu0
      %v531 = vadd.f32 0.0, %v530
      %v532 = vpop.f32.mrf.mxu0
      %533 = vmatprep.mubr.f32.mxu0 0.0
      %534 = vmatmul.mubr.f32.gmra.mxu0 %v358
      %v535 = vpop.f32.mrf.mxu0
      %v536 = vadd.f32 0.0, %v535
      %v537 = vpop.f32.mrf.mxu0
      %538 = vmatprep.mubr.f32.mxu0 0.0
      %539 = vmatmul.mubr.f32.gmra.mxu0 %v361
      %v540 = vpop.f32.mrf.mxu0
      %v541 = vadd.f32 0.0, %v540
      %v542 = vpop.f32.mrf.mxu0
      %543 = vmatprep.mubr.f32.mxu0 0.0
      %544 = vmatmul.mubr.f32.gmra.mxu0 %v364
      %v545 = vpop.f32.mrf.mxu0
      %v546 = vadd.f32 0.0, %v545
      %v547 = vpop.f32.mrf.mxu0
      %548 = vmatprep.mubr.f32.mxu0 0.0
      %549 = vmatmul.mubr.f32.gmra.mxu0 %v367
      %v550 = vpop.f32.mrf.mxu0
      %v551 = vadd.f32 0.0, %v550
      %v552 = vpop.f32.mrf.mxu0
      %553 = vmatprep.mubr.f32.mxu0 0.0
      %554 = vmatmul.mubr.f32.gmra.mxu0 %v370
      %v555 = vpop.f32.mrf.mxu0
      %v556 = vadd.f32 0.0, %v555
      %v557 = vpop.f32.mrf.mxu0
      %558 = vmatprep.mubr.f32.mxu0 0.0
      %559 = vmatmul.mubr.f32.gmra.mxu0 %v373
      %v560 = vpop.f32.mrf.mxu0
      %v561 = vadd.f32 0.0, %v560
      %v562 = vpop.f32.mrf.mxu0
      %563 = vmatprep.mubr.f32.mxu0 0.0
      %564 = vmatmul.mubr.f32.gmra.mxu0 %v376
      %v565 = vpop.f32.mrf.mxu0
      %v566 = vadd.f32 0.0, %v565
      %v567 = vpop.f32.mrf.mxu0
      %568 = vmatprep.mubr.f32.mxu0 0.0
      %569 = vmatmul.mubr.f32.gmra.mxu0 %v379
      %v570 = vpop.f32.mrf.mxu0
      %v571 = vadd.f32 0.0, %v570
      %v572 = vpop.f32.mrf.mxu0
      %573 = vmatprep.mubr.f32.mxu0 0.0
      %574 = vmatmul.mubr.f32.gmra.mxu0 %v382
      %v575 = vpop.f32.mrf.mxu0
      %v576 = vadd.f32 0.0, %v575
      %v577 = vpop.f32.mrf.mxu0
      %578 = vmatprep.mubr.f32.mxu0 0.0
      %579 = vmatmul.mubr.f32.gmra.mxu0 %v385
      %v580 = vpop.f32.mrf.mxu0
      %v581 = vadd.f32 0.0, %v580
      %v582 = vpop.f32.mrf.mxu0
      %583 = vmatprep.mubr.f32.mxu0 0.0
      %584 = vmatmul.mubr.f32.gmra.mxu0 %v388
      %v585 = vpop.f32.mrf.mxu0
      %v586 = vadd.f32 0.0, %v585
      %v587 = vpop.f32.mrf.mxu0
      %588 = vmatprep.mubr.f32.mxu0 0.0
      %589 = vmatmul.mubr.f32.gmra.mxu0 %v391
      %v590 = vpop.f32.mrf.mxu0
      %v591 = vadd.f32 0.0, %v590
      %v592 = vpop.f32.mrf.mxu0
      %593 = vmatprep.mubr.f32.mxu0 0.0
      %594 = vmatmul.mubr.f32.gmra.mxu0 %v394
      %v595 = vpop.f32.mrf.mxu0
      %v596 = vadd.f32 0.0, %v595
      %v597 = vpop.f32.mrf.mxu0
      %598 = vmatprep.mubr.f32.mxu0 0.0
      %599 = vmatmul.mubr.f32.gmra.mxu0 %v397
      %v600 = vpop.f32.mrf.mxu0
      %v601 = vadd.f32 0.0, %v600
      %v602 = vpop.f32.mrf.mxu0
      %603 = vmatprep.mubr.f32.mxu0 0.0
      %604 = vmatmul.mubr.f32.gmra.mxu0 %v400
      %v605 = vpop.f32.mrf.mxu0
      %v606 = vadd.f32 0.0, %v605
      %v607 = vpop.f32.mrf.mxu0
      %608 = vmatprep.mubr.f32.mxu0 0.0
      %609 = vmatmul.mubr.f32.gmra.mxu0 %v403
      %v610 = vpop.f32.mrf.mxu0
      %v611 = vadd.f32 0.0, %v610
      %v612 = vpop.f32.mrf.mxu0
      %613 = vmatprep.mubr.f32.mxu0 0.0
      %614 = vmatmul.mubr.f32.gmra.mxu0 %v406
      %v615 = vpop.f32.mrf.mxu0
      %v616 = vadd.f32 0.0, %v615
      %v617 = vpop.f32.mrf.mxu0
      %618 = vmatprep.mubr.f32.mxu0 0.0
      %619 = vmatmul.mubr.f32.gmra.mxu0 %v409
      %v620 = vpop.f32.mrf.mxu0
      %v621 = vadd.f32 0.0, %v620
      %v622 = vpop.f32.mrf.mxu0
      %623 = vmatprep.mubr.f32.mxu0 0.0
      %624 = vmatmul.mubr.f32.gmra.mxu0 %v412
      %v625 = vpop.f32.mrf.mxu0
      %v626 = vadd.f32 0.0, %v625
      %v627 = vpop.f32.mrf.mxu0
      %628 = vmatprep.mubr.f32.mxu0 0.0
      %629 = vmatmul.mubr.f32.gmra.mxu0 %v415
      %v630 = vpop.f32.mrf.mxu0
      %v631 = vadd.f32 0.0, %v630
      %v632 = vpop.f32.mrf.mxu0
      %633 = vmatprep.mubr.f32.mxu0 0.0
      %634 = vmatmul.mubr.f32.gmra.mxu0 %v418
      %v635 = vpop.f32.mrf.mxu0
      %v636 = vadd.f32 0.0, %v635
      %v637 = vpop.f32.mrf.mxu0
      %638 = vmatprep.mubr.f32.mxu0 0.0
      %639 = vmatmul.mubr.f32.gmra.mxu0 %v421
      %v640 = vpop.f32.mrf.mxu0
      %v641 = vadd.f32 0.0, %v640
      %v642 = vpop.f32.mrf.mxu0
      %643 = vmatprep.mubr.f32.mxu0 0.0
      %644 = vmatmul.mubr.f32.gmra.mxu0 %v424
      %v645 = vpop.f32.mrf.mxu0
      %v646 = vadd.f32 0.0, %v645
      %v647 = vpop.f32.mrf.mxu0
      %648 = vmatprep.mubr.f32.mxu0 0.0
      %649 = vmatmul.mubr.f32.gmra.mxu0 %v427
      %v650 = vpop.f32.mrf.mxu0
      %v651 = vadd.f32 0.0, %v650
      %v652 = vpop.f32.mrf.mxu0
      %653 = vmatprep.mubr.f32.mxu0 0.0
      %654 = vmatmul.mubr.f32.gmra.mxu0 %v430
      %v655 = vpop.f32.mrf.mxu0
      %v656 = vadd.f32 0.0, %v655
      %v657 = vpop.f32.mrf.mxu0
      %658 = vmatprep.mubr.f32.mxu0 0.0
      %659 = vmatmul.mubr.f32.gmra.mxu0 %v433
      %v660 = vpop.f32.mrf.mxu0
      %v661 = vadd.f32 0.0, %v660
      %v662 = vpop.f32.mrf.mxu0
      %663 = vdwg.mxu0
      %v664 = vmax.f32 %v506, 0.0
      %v665 = vmax.f32 %v511, 0.0
      %v666 = vmax.f32 %v516, 0.0
      %v667 = vmax.f32 %v521, 0.0
      %v668 = vmax.f32 %v526, 0.0
      %v669 = vmax.f32 %v531, 0.0
      %v670 = vmax.f32 %v536, 0.0
      %v671 = vmax.f32 %v541, 0.0
      %v672 = vmax.f32 %v546, 0.0
      %v673 = vmax.f32 %v551, 0.0
      %v674 = vmax.f32 %v556, 0.0
      %v675 = vmax.f32 %v561, 0.0
      %v676 = vmax.f32 %v566, 0.0
      %v677 = vmax.f32 %v571, 0.0
      %v678 = vmax.f32 %v576, 0.0
      %v679 = vmax.f32 %v581, 0.0
      %v680 = vmax.f32 %v586, 0.0
      %v681 = vmax.f32 %v591, 0.0
      %v682 = vmax.f32 %v596, 0.0
      %v683 = vmax.f32 %v601, 0.0
      %v684 = vmax.f32 %v606, 0.0
      %v685 = vmax.f32 %v611, 0.0
      %v686 = vmax.f32 %v616, 0.0
      %v687 = vmax.f32 %v621, 0.0
      %v688 = vmax.f32 %v626, 0.0
      %v689 = vmax.f32 %v631, 0.0
      %v690 = vmax.f32 %v636, 0.0
      %v691 = vmax.f32 %v641, 0.0
      %v692 = vmax.f32 %v646, 0.0
      %v693 = vmax.f32 %v651, 0.0
      %v694 = vmax.f32 %v656, 0.0
      %v695 = vmax.f32 %v661, 0.0
      %v696 = vld [vmem:[%s2] sm:$0xff]
      %v697 = vld [vmem:[%s2 + $0x8] sm:$0xff]
      %v698 = vld [vmem:[%s2 + $0x10] sm:$0xff]
      %v699 = vld [vmem:[%s2 + $0x18] sm:$0xff]
      %v700 = vld [vmem:[%s2 + $0x20] sm:$0xff]
      %v701 = vld [vmem:[%s2 + $0x28] sm:$0xff]
      %v702 = vld [vmem:[%s2 + $0x30] sm:$0xff]
      %v703 = vld [vmem:[%s2 + $0x38] sm:$0xff]
      %v704 = vld [vmem:[%s2 + $0x40] sm:$0xff]
      %v705 = vld [vmem:[%s2 + $0x48] sm:$0xff]
      %v706 = vld [vmem:[%s2 + $0x50] sm:$0xff]
      %v707 = vld [vmem:[%s2 + $0x58] sm:$0xff]
      %v708 = vld [vmem:[%s2 + $0x60] sm:$0xff]
      %v709 = vld [vmem:[%s2 + $0x68] sm:$0xff]
      %v710 = vld [vmem:[%s2 + $0x70] sm:$0xff]
      %v711 = vld [vmem:[%s2 + $0x78] sm:$0xff]
      %712 = vmatprep.subr.mxu0 0.0
      %713 = vmatpush1.msra.mxu0 %v711
      %714 = vmatprep.subr.mxu0 0.0
      %715 = vmatpush1.msra.mxu0 %v710
      %716 = vmatprep.subr.mxu0 0.0
      %717 = vmatpush1.msra.mxu0 %v709
      %718 = vmatprep.subr.mxu0 0.0
      %719 = vmatpush1.msra.mxu0 %v708
      %720 = vmatprep.subr.mxu0 0.0
      %721 = vmatpush1.msra.mxu0 %v707
      %722 = vmatprep.subr.mxu0 0.0
      %723 = vmatpush1.msra.mxu0 %v706
      %724 = vmatprep.subr.mxu0 0.0
      %725 = vmatpush1.msra.mxu0 %v705
      %726 = vmatprep.subr.mxu0 0.0
      %727 = vmatpush1.msra.mxu0 %v704
      %728 = vmatprep.subr.mxu0 0.0
      %729 = vmatpush1.msra.mxu0 %v703
      %730 = vmatprep.subr.mxu0 0.0
      %731 = vmatpush1.msra.mxu0 %v702
      %732 = vmatprep.subr.mxu0 0.0
      %733 = vmatpush1.msra.mxu0 %v701
      %734 = vmatprep.subr.mxu0 0.0
      %735 = vmatpush1.msra.mxu0 %v700
      %736 = vmatprep.subr.mxu0 0.0
      %737 = vmatpush1.msra.mxu0 %v699
      %738 = vmatprep.subr.mxu0 0.0
      %739 = vmatpush1.msra.mxu0 %v698
      %740 = vmatprep.subr.mxu0 0.0
      %741 = vmatpush1.msra.mxu0 %v697
      %742 = vmatprep.subr.mxu0 0.0
      %743 = vmatpush1.msra.mxu0 %v696
      %744 = vmatprep.subr.mxu0 0.0
      %745 = vmatpush2.msra.mxu0 0.0
      %746 = vmatprep.subr.mxu0 0.0
      %747 = vmatpush2.msra.mxu0 0.0
      %748 = vmatprep.subr.mxu0 0.0
      %749 = vmatpush2.msra.mxu0 0.0
      %750 = vmatprep.subr.mxu0 0.0
      %751 = vmatpush2.msra.mxu0 0.0
      %752 = vmatprep.subr.mxu0 0.0
      %753 = vmatpush2.msra.mxu0 0.0
      %754 = vmatprep.subr.mxu0 0.0
      %755 = vmatpush2.msra.mxu0 0.0
      %756 = vmatprep.subr.mxu0 0.0
      %757 = vmatpush2.msra.mxu0 0.0
      %758 = vmatprep.subr.mxu0 0.0
      %759 = vmatpush2.msra.mxu0 0.0
      %760 = vmatprep.subr.mxu0 0.0
      %761 = vmatpush2.msra.mxu0 0.0
      %762 = vmatprep.subr.mxu0 0.0
      %763 = vmatpush2.msra.mxu0 0.0
      %764 = vmatprep.subr.mxu0 0.0
      %765 = vmatpush2.msra.mxu0 0.0
      %766 = vmatprep.subr.mxu0 0.0
      %767 = vmatpush2.msra.mxu0 0.0
      %768 = vmatprep.subr.mxu0 0.0
      %769 = vmatpush2.msra.mxu0 0.0
      %770 = vmatprep.subr.mxu0 0.0
      %771 = vmatpush2.msra.mxu0 0.0
      %772 = vmatprep.subr.mxu0 0.0
      %773 = vmatpush2.msra.mxu0 0.0
      %774 = vmatprep.subr.mxu0 0.0
      %775 = vmatpush2.msra.mxu0 0.0
      %776 = vmatprep.mubr.f32.mxu0 0.0
      %777 = vmatmul.mubr.f32.gmra.mxu0 %v664
      %v778 = vpop.f32.mrf.mxu0
      %v779 = vadd.f32 0.0, %v778
      %v780 = vpop.f32.mrf.mxu0
      %781 = vmatprep.mubr.f32.mxu0 0.0
      %782 = vmatmul.mubr.f32.gmra.mxu0 %v665
      %v783 = vpop.f32.mrf.mxu0
      %v784 = vadd.f32 0.0, %v783
      %v785 = vpop.f32.mrf.mxu0
      %786 = vmatprep.mubr.f32.mxu0 0.0
      %787 = vmatmul.mubr.f32.gmra.mxu0 %v666
      %v788 = vpop.f32.mrf.mxu0
      %v789 = vadd.f32 0.0, %v788
      %v790 = vpop.f32.mrf.mxu0
      %791 = vmatprep.mubr.f32.mxu0 0.0
      %792 = vmatmul.mubr.f32.gmra.mxu0 %v667
      %v793 = vpop.f32.mrf.mxu0
      %v794 = vadd.f32 0.0, %v793
      %v795 = vpop.f32.mrf.mxu0
      %796 = vmatprep.mubr.f32.mxu0 0.0
      %797 = vmatmul.mubr.f32.gmra.mxu0 %v668
      %v798 = vpop.f32.mrf.mxu0
      %v799 = vadd.f32 0.0, %v798
      %v800 = vpop.f32.mrf.mxu0
      %801 = vmatprep.mubr.f32.mxu0 0.0
      %802 = vmatmul.mubr.f32.gmra.mxu0 %v669
      %v803 = vpop.f32.mrf.mxu0
      %v804 = vadd.f32 0.0, %v803
      %v805 = vpop.f32.mrf.mxu0
      %806 = vmatprep.mubr.f32.mxu0 0.0
      %807 = vmatmul.mubr.f32.gmra.mxu0 %v670
      %v808 = vpop.f32.mrf.mxu0
      %v809 = vadd.f32 0.0, %v808
      %v810 = vpop.f32.mrf.mxu0
      %811 = vmatprep.mubr.f32.mxu0 0.0
      %812 = vmatmul.mubr.f32.gmra.mxu0 %v671
      %v813 = vpop.f32.mrf.mxu0
      %v814 = vadd.f32 0.0, %v813
      %v815 = vpop.f32.mrf.mxu0
      %816 = vmatprep.mubr.f32.mxu0 0.0
      %817 = vmatmul.mubr.f32.gmra.mxu0 %v672
      %v818 = vpop.f32.mrf.mxu0
      %v819 = vadd.f32 0.0, %v818
      %v820 = vpop.f32.mrf.mxu0
      %821 = vmatprep.mubr.f32.mxu0 0.0
      %822 = vmatmul.mubr.f32.gmra.mxu0 %v673
      %v823 = vpop.f32.mrf.mxu0
      %v824 = vadd.f32 0.0, %v823
      %v825 = vpop.f32.mrf.mxu0
      %826 = vmatprep.mubr.f32.mxu0 0.0
      %827 = vmatmul.mubr.f32.gmra.mxu0 %v674
      %v828 = vpop.f32.mrf.mxu0
      %v829 = vadd.f32 0.0, %v828
      %v830 = vpop.f32.mrf.mxu0
      %831 = vmatprep.mubr.f32.mxu0 0.0
      %832 = vmatmul.mubr.f32.gmra.mxu0 %v675
      %v833 = vpop.f32.mrf.mxu0
      %v834 = vadd.f32 0.0, %v833
      %v835 = vpop.f32.mrf.mxu0
      %836 = vmatprep.mubr.f32.mxu0 0.0
      %837 = vmatmul.mubr.f32.gmra.mxu0 %v676
      %v838 = vpop.f32.mrf.mxu0
      %v839 = vadd.f32 0.0, %v838
      %v840 = vpop.f32.mrf.mxu0
      %841 = vmatprep.mubr.f32.mxu0 0.0
      %842 = vmatmul.mubr.f32.gmra.mxu0 %v677
      %v843 = vpop.f32.mrf.mxu0
      %v844 = vadd.f32 0.0, %v843
      %v845 = vpop.f32.mrf.mxu0
      %846 = vmatprep.mubr.f32.mxu0 0.0
      %847 = vmatmul.mubr.f32.gmra.mxu0 %v678
      %v848 = vpop.f32.mrf.mxu0
      %v849 = vadd.f32 0.0, %v848
      %v850 = vpop.f32.mrf.mxu0
      %851 = vmatprep.mubr.f32.mxu0 0.0
      %852 = vmatmul.mubr.f32.gmra.mxu0 %v679
      %v853 = vpop.f32.mrf.mxu0
      %v854 = vadd.f32 0.0, %v853
      %v855 = vpop.f32.mrf.mxu0
      %856 = vmatprep.mubr.f32.mxu0 0.0
      %857 = vmatmul.mubr.f32.gmra.mxu0 %v680
      %v858 = vpop.f32.mrf.mxu0
      %v859 = vadd.f32 0.0, %v858
      %v860 = vpop.f32.mrf.mxu0
      %861 = vmatprep.mubr.f32.mxu0 0.0
      %862 = vmatmul.mubr.f32.gmra.mxu0 %v681
      %v863 = vpop.f32.mrf.mxu0
      %v864 = vadd.f32 0.0, %v863
      %v865 = vpop.f32.mrf.mxu0
      %866 = vmatprep.mubr.f32.mxu0 0.0
      %867 = vmatmul.mubr.f32.gmra.mxu0 %v682
      %v868 = vpop.f32.mrf.mxu0
      %v869 = vadd.f32 0.0, %v868
      %v870 = vpop.f32.mrf.mxu0
      %871 = vmatprep.mubr.f32.mxu0 0.0
      %872 = vmatmul.mubr.f32.gmra.mxu0 %v683
      %v873 = vpop.f32.mrf.mxu0
      %v874 = vadd.f32 0.0, %v873
      %v875 = vpop.f32.mrf.mxu0
      %876 = vmatprep.mubr.f32.mxu0 0.0
      %877 = vmatmul.mubr.f32.gmra.mxu0 %v684
      %v878 = vpop.f32.mrf.mxu0
      %v879 = vadd.f32 0.0, %v878
      %v880 = vpop.f32.mrf.mxu0
      %881 = vmatprep.mubr.f32.mxu0 0.0
      %882 = vmatmul.mubr.f32.gmra.mxu0 %v685
      %v883 = vpop.f32.mrf.mxu0
      %v884 = vadd.f32 0.0, %v883
      %v885 = vpop.f32.mrf.mxu0
      %886 = vmatprep.mubr.f32.mxu0 0.0
      %887 = vmatmul.mubr.f32.gmra.mxu0 %v686
      %v888 = vpop.f32.mrf.mxu0
      %v889 = vadd.f32 0.0, %v888
      %v890 = vpop.f32.mrf.mxu0
      %891 = vmatprep.mubr.f32.mxu0 0.0
      %892 = vmatmul.mubr.f32.gmra.mxu0 %v687
      %v893 = vpop.f32.mrf.mxu0
      %v894 = vadd.f32 0.0, %v893
      %v895 = vpop.f32.mrf.mxu0
      %896 = vmatprep.mubr.f32.mxu0 0.0
      %897 = vmatmul.mubr.f32.gmra.mxu0 %v688
      %v898 = vpop.f32.mrf.mxu0
      %v899 = vadd.f32 0.0, %v898
      %v900 = vpop.f32.mrf.mxu0
      %901 = vmatprep.mubr.f32.mxu0 0.0
      %902 = vmatmul.mubr.f32.gmra.mxu0 %v689
      %v903 = vpop.f32.mrf.mxu0
      %v904 = vadd.f32 0.0, %v903
      %v905 = vpop.f32.mrf.mxu0
      %906 = vmatprep.mubr.f32.mxu0 0.0
      %907 = vmatmul.mubr.f32.gmra.mxu0 %v690
      %v908 = vpop.f32.mrf.mxu0
      %v909 = vadd.f32 0.0, %v908
      %v910 = vpop.f32.mrf.mxu0
      %911 = vmatprep.mubr.f32.mxu0 0.0
      %912 = vmatmul.mubr.f32.gmra.mxu0 %v691
      %v913 = vpop.f32.mrf.mxu0
      %v914 = vadd.f32 0.0, %v913
      %v915 = vpop.f32.mrf.mxu0
      %916 = vmatprep.mubr.f32.mxu0 0.0
      %917 = vmatmul.mubr.f32.gmra.mxu0 %v692
      %v918 = vpop.f32.mrf.mxu0
      %v919 = vadd.f32 0.0, %v918
      %v920 = vpop.f32.mrf.mxu0
      %921 = vmatprep.mubr.f32.mxu0 0.0
      %922 = vmatmul.mubr.f32.gmra.mxu0 %v693
      %v923 = vpop.f32.mrf.mxu0
      %v924 = vadd.f32 0.0, %v923
      %v925 = vpop.f32.mrf.mxu0
      %926 = vmatprep.mubr.f32.mxu0 0.0
      %927 = vmatmul.mubr.f32.gmra.mxu0 %v694
      %v928 = vpop.f32.mrf.mxu0
      %v929 = vadd.f32 0.0, %v928
      %v930 = vpop.f32.mrf.mxu0
      %931 = vmatprep.mubr.f32.mxu0 0.0
      %932 = vmatmul.mubr.f32.gmra.mxu0 %v695
      %v933 = vpop.f32.mrf.mxu0
      %v934 = vadd.f32 0.0, %v933
      %v935 = vpop.f32.mrf.mxu0
      %936 = vdwg.mxu0
      %v937 = vsub.f32 1.0, %v779
      %v938 = vsub.f32 1.0, %v784
      %v939 = vsub.f32 1.0, %v789
      %v940 = vsub.f32 1.0, %v794
      %v941 = vsub.f32 1.0, %v799
      %v942 = vsub.f32 1.0, %v804
      %v943 = vsub.f32 1.0, %v809
      %v944 = vsub.f32 1.0, %v814
      %v945 = vsub.f32 1.0, %v819
      %v946 = vsub.f32 1.0, %v824
      %v947 = vsub.f32 1.0, %v829
      %v948 = vsub.f32 1.0, %v834
      %v949 = vsub.f32 1.0, %v839
      %v950 = vsub.f32 1.0, %v844
      %v951 = vsub.f32 1.0, %v849
      %v952 = vsub.f32 1.0, %v854
      %v953 = vsub.f32 1.0, %v859
      %v954 = vsub.f32 1.0, %v864
      %v955 = vsub.f32 1.0, %v869
      %v956 = vsub.f32 1.0, %v874
      %v957 = vsub.f32 1.0, %v879
      %v958 = vsub.f32 1.0, %v884
      %v959 = vsub.f32 1.0, %v889
      %v960 = vsub.f32 1.0, %v894
      %v961 = vsub.f32 1.0, %v899
      %v962 = vsub.f32 1.0, %v904
      %v963 = vsub.f32 1.0, %v909
      %v964 = vsub.f32 1.0, %v914
      %v965 = vsub.f32 1.0, %v919
      %v966 = vsub.f32 1.0, %v924
      %v967 = vsub.f32 1.0, %v929
      %v968 = vsub.f32 1.0, %v934
      %v969 = vmax.f32 %v937, 0.0
      %v970 = vmax.f32 %v938, 0.0
      %v971 = vmax.f32 %v939, 0.0
      %v972 = vmax.f32 %v940, 0.0
      %v973 = vmax.f32 %v941, 0.0
      %v974 = vmax.f32 %v942, 0.0
      %v975 = vmax.f32 %v943, 0.0
      %v976 = vmax.f32 %v944, 0.0
      %v977 = vmax.f32 %v945, 0.0
      %v978 = vmax.f32 %v946, 0.0
      %v979 = vmax.f32 %v947, 0.0
      %v980 = vmax.f32 %v948, 0.0
      %v981 = vmax.f32 %v949, 0.0
      %v982 = vmax.f32 %v950, 0.0
      %v983 = vmax.f32 %v951, 0.0
      %v984 = vmax.f32 %v952, 0.0
      %v985 = vmax.f32 %v953, 0.0
      %v986 = vmax.f32 %v954, 0.0
      %v987 = vmax.f32 %v955, 0.0
      %v988 = vmax.f32 %v956, 0.0
      %v989 = vmax.f32 %v957, 0.0
      %v990 = vmax.f32 %v958, 0.0
      %v991 = vmax.f32 %v959, 0.0
      %v992 = vmax.f32 %v960, 0.0
      %v993 = vmax.f32 %v961, 0.0
      %v994 = vmax.f32 %v962, 0.0
      %v995 = vmax.f32 %v963, 0.0
      %v996 = vmax.f32 %v964, 0.0
      %v997 = vmax.f32 %v965, 0.0
      %v998 = vmax.f32 %v966, 0.0
      %v999 = vmax.f32 %v967, 0.0
      %v1000 = vmax.f32 %v968, 0.0
      %v1001 = vmin.f32 %v969, 1.0
      %v1002 = vmin.f32 %v970, 1.0
      %v1003 = vmin.f32 %v971, 1.0
      %v1004 = vmin.f32 %v972, 1.0
      %v1005 = vmin.f32 %v973, 1.0
      %v1006 = vmin.f32 %v974, 1.0
      %v1007 = vmin.f32 %v975, 1.0
      %v1008 = vmin.f32 %v976, 1.0
      %v1009 = vmin.f32 %v977, 1.0
      %v1010 = vmin.f32 %v978, 1.0
      %v1011 = vmin.f32 %v979, 1.0
      %v1012 = vmin.f32 %v980, 1.0
      %v1013 = vmin.f32 %v981, 1.0
      %v1014 = vmin.f32 %v982, 1.0
      %v1015 = vmin.f32 %v983, 1.0
      %v1016 = vmin.f32 %v984, 1.0
      %v1017 = vmin.f32 %v985, 1.0
      %v1018 = vmin.f32 %v986, 1.0
      %v1019 = vmin.f32 %v987, 1.0
      %v1020 = vmin.f32 %v988, 1.0
      %v1021 = vmin.f32 %v989, 1.0
      %v1022 = vmin.f32 %v990, 1.0
      %v1023 = vmin.f32 %v991, 1.0
      %v1024 = vmin.f32 %v992, 1.0
      %v1025 = vmin.f32 %v993, 1.0
      %v1026 = vmin.f32 %v994, 1.0
      %v1027 = vmin.f32 %v995, 1.0
      %v1028 = vmin.f32 %v996, 1.0
      %v1029 = vmin.f32 %v997, 1.0
      %v1030 = vmin.f32 %v998, 1.0
      %v1031 = vmin.f32 %v999, 1.0
      %v1032 = vmin.f32 %v1000, 1.0
      %1033 = vst [vmem:[%s293] sm:$0xff] %v1001
      %1034 = vst [vmem:[%s293 + $0x8] sm:$0xff] %v1002
      %1035 = vst [vmem:[%s293 + $0x10] sm:$0xff] %v1003
      %1036 = vst [vmem:[%s293 + $0x18] sm:$0xff] %v1004
      %1037 = vst [vmem:[%s293 + $0x20] sm:$0xff] %v1005
      %1038 = vst [vmem:[%s293 + $0x28] sm:$0xff] %v1006
      %1039 = vst [vmem:[%s293 + $0x30] sm:$0xff] %v1007
      %1040 = vst [vmem:[%s293 + $0x38] sm:$0xff] %v1008
      %1041 = vst [vmem:[%s293 + $0x40] sm:$0xff] %v1009
      %1042 = vst [vmem:[%s293 + $0x48] sm:$0xff] %v1010
      %1043 = vst [vmem:[%s293 + $0x50] sm:$0xff] %v1011
      %1044 = vst [vmem:[%s293 + $0x58] sm:$0xff] %v1012
      %1045 = vst [vmem:[%s293 + $0x60] sm:$0xff] %v1013
      %1046 = vst [vmem:[%s293 + $0x68] sm:$0xff] %v1014
      %1047 = vst [vmem:[%s293 + $0x70] sm:$0xff] %v1015
      %1048 = vst [vmem:[%s293 + $0x78] sm:$0xff] %v1016
      %1049 = vst [vmem:[%s293 + $0x80] sm:$0xff] %v1017
      %1050 = vst [vmem:[%s293 + $0x88] sm:$0xff] %v1018
      %1051 = vst [vmem:[%s293 + $0x90] sm:$0xff] %v1019
      %1052 = vst [vmem:[%s293 + $0x98] sm:$0xff] %v1020
      %1053 = vst [vmem:[%s293 + $0xa0] sm:$0xff] %v1021
      %1054 = vst [vmem:[%s293 + $0xa8] sm:$0xff] %v1022
      %1055 = vst [vmem:[%s293 + $0xb0] sm:$0xff] %v1023
      %1056 = vst [vmem:[%s293 + $0xb8] sm:$0xff] %v1024
      %1057 = vst [vmem:[%s293 + $0xc0] sm:$0xff] %v1025
      %1058 = vst [vmem:[%s293 + $0xc8] sm:$0xff] %v1026
      %1059 = vst [vmem:[%s293 + $0xd0] sm:$0xff] %v1027
      %1060 = vst [vmem:[%s293 + $0xd8] sm:$0xff] %v1028
      %1061 = vst [vmem:[%s293 + $0xe0] sm:$0xff] %v1029
      %1062 = vst [vmem:[%s293 + $0xe8] sm:$0xff] %v1030
      %1063 = vst [vmem:[%s293 + $0xf0] sm:$0xff] %v1031
      %1064 = vst [vmem:[%s293 + $0xf8] sm:$0xff] %v1032
      %v1065 = vld [vmem:[%s3] sm:$0x1]
      %v1067 = vlaneseq
      %v1068 = vshrl.u32 %v1067, 7
      %v1069 = vsub.s32 0, %v1068
      %v1070 = vrot.slane %v1065, %v1069
      %v1072 = vmul.f32 %v1001, %v1070
      %v1073 = vmul.f32 %v1002, %v1070
      %v1074 = vmul.f32 %v1003, %v1070
      %v1075 = vmul.f32 %v1004, %v1070
      %v1076 = vmul.f32 %v1005, %v1070
      %v1077 = vmul.f32 %v1006, %v1070
      %v1078 = vmul.f32 %v1007, %v1070
      %v1079 = vmul.f32 %v1008, %v1070
      %v1080 = vmul.f32 %v1009, %v1070
      %v1081 = vmul.f32 %v1010, %v1070
      %v1082 = vmul.f32 %v1011, %v1070
      %v1083 = vmul.f32 %v1012, %v1070
      %v1084 = vmul.f32 %v1013, %v1070
      %v1085 = vmul.f32 %v1014, %v1070
      %v1086 = vmul.f32 %v1015, %v1070
      %v1087 = vmul.f32 %v1016, %v1070
      %v1088 = vmul.f32 %v1017, %v1070
      %v1089 = vmul.f32 %v1018, %v1070
      %v1090 = vmul.f32 %v1019, %v1070
      %v1091 = vmul.f32 %v1020, %v1070
      %v1092 = vmul.f32 %v1021, %v1070
      %v1093 = vmul.f32 %v1022, %v1070
      %v1094 = vmul.f32 %v1023, %v1070
      %v1095 = vmul.f32 %v1024, %v1070
      %v1096 = vmul.f32 %v1025, %v1070
      %v1097 = vmul.f32 %v1026, %v1070
      %v1098 = vmul.f32 %v1027, %v1070
      %v1099 = vmul.f32 %v1028, %v1070
      %v1100 = vmul.f32 %v1029, %v1070
      %v1101 = vmul.f32 %v1030, %v1070
      %v1102 = vmul.f32 %v1031, %v1070
      %v1103 = vmul.f32 %v1032, %v1070
      %1104 = vadd.xlane.f32.xlu0 %v1072
      %v1105 = vpop.xlane.xlu0 %1104
      %1106 = vadd.xlane.f32.xlu0 %v1073
      %v1107 = vpop.xlane.xlu0 %1106
      %1108 = vadd.xlane.f32.xlu0 %v1074
      %v1109 = vpop.xlane.xlu0 %1108
      %1110 = vadd.xlane.f32.xlu0 %v1075
      %v1111 = vpop.xlane.xlu0 %1110
      %1112 = vadd.xlane.f32.xlu0 %v1076
      %v1113 = vpop.xlane.xlu0 %1112
      %1114 = vadd.xlane.f32.xlu0 %v1077
      %v1115 = vpop.xlane.xlu0 %1114
      %1116 = vadd.xlane.f32.xlu0 %v1078
      %v1117 = vpop.xlane.xlu0 %1116
      %1118 = vadd.xlane.f32.xlu0 %v1079
      %v1119 = vpop.xlane.xlu0 %1118
      %1120 = vadd.xlane.f32.xlu0 %v1080
      %v1121 = vpop.xlane.xlu0 %1120
      %1122 = vadd.xlane.f32.xlu0 %v1081
      %v1123 = vpop.xlane.xlu0 %1122
      %1124 = vadd.xlane.f32.xlu0 %v1082
      %v1125 = vpop.xlane.xlu0 %1124
      %1126 = vadd.xlane.f32.xlu0 %v1083
      %v1127 = vpop.xlane.xlu0 %1126
      %1128 = vadd.xlane.f32.xlu0 %v1084
      %v1129 = vpop.xlane.xlu0 %1128
      %1130 = vadd.xlane.f32.xlu0 %v1085
      %v1131 = vpop.xlane.xlu0 %1130
      %1132 = vadd.xlane.f32.xlu0 %v1086
      %v1133 = vpop.xlane.xlu0 %1132
      %1134 = vadd.xlane.f32.xlu0 %v1087
      %v1135 = vpop.xlane.xlu0 %1134
      %1136 = vadd.xlane.f32.xlu0 %v1088
      %v1137 = vpop.xlane.xlu0 %1136
      %1138 = vadd.xlane.f32.xlu0 %v1089
      %v1139 = vpop.xlane.xlu0 %1138
      %1140 = vadd.xlane.f32.xlu0 %v1090
      %v1141 = vpop.xlane.xlu0 %1140
      %1142 = vadd.xlane.f32.xlu0 %v1091
      %v1143 = vpop.xlane.xlu0 %1142
      %1144 = vadd.xlane.f32.xlu0 %v1092
      %v1145 = vpop.xlane.xlu0 %1144
      %1146 = vadd.xlane.f32.xlu0 %v1093
      %v1147 = vpop.xlane.xlu0 %1146
      %1148 = vadd.xlane.f32.xlu0 %v1094
      %v1149 = vpop.xlane.xlu0 %1148
      %1150 = vadd.xlane.f32.xlu0 %v1095
      %v1151 = vpop.xlane.xlu0 %1150
      %1152 = vadd.xlane.f32.xlu0 %v1096
      %v1153 = vpop.xlane.xlu0 %1152
      %1154 = vadd.xlane.f32.xlu0 %v1097
      %v1155 = vpop.xlane.xlu0 %1154
      %1156 = vadd.xlane.f32.xlu0 %v1098
      %v1157 = vpop.xlane.xlu0 %1156
      %1158 = vadd.xlane.f32.xlu0 %v1099
      %v1159 = vpop.xlane.xlu0 %1158
      %1160 = vadd.xlane.f32.xlu0 %v1100
      %v1161 = vpop.xlane.xlu0 %1160
      %1162 = vadd.xlane.f32.xlu0 %v1101
      %v1163 = vpop.xlane.xlu0 %1162
      %1164 = vadd.xlane.f32.xlu0 %v1102
      %v1165 = vpop.xlane.xlu0 %1164
      %1166 = vadd.xlane.f32.xlu0 %v1103
      %v1167 = vpop.xlane.xlu0 %1166
      %v1168 = vmax.f32 %v1105, 0.0
      %v1169 = vmax.f32 %v1107, 0.0
      %v1170 = vmax.f32 %v1109, 0.0
      %v1171 = vmax.f32 %v1111, 0.0
      %v1172 = vmax.f32 %v1113, 0.0
      %v1173 = vmax.f32 %v1115, 0.0
      %v1174 = vmax.f32 %v1117, 0.0
      %v1175 = vmax.f32 %v1119, 0.0
      %v1176 = vmax.f32 %v1121, 0.0
      %v1177 = vmax.f32 %v1123, 0.0
      %v1178 = vmax.f32 %v1125, 0.0
      %v1179 = vmax.f32 %v1127, 0.0
      %v1180 = vmax.f32 %v1129, 0.0
      %v1181 = vmax.f32 %v1131, 0.0
      %v1182 = vmax.f32 %v1133, 0.0
      %v1183 = vmax.f32 %v1135, 0.0
      %v1184 = vmax.f32 %v1137, 0.0
      %v1185 = vmax.f32 %v1139, 0.0
      %v1186 = vmax.f32 %v1141, 0.0
      %v1187 = vmax.f32 %v1143, 0.0
      %v1188 = vmax.f32 %v1145, 0.0
      %v1189 = vmax.f32 %v1147, 0.0
      %v1190 = vmax.f32 %v1149, 0.0
      %v1191 = vmax.f32 %v1151, 0.0
      %v1192 = vmax.f32 %v1153, 0.0
      %v1193 = vmax.f32 %v1155, 0.0
      %v1194 = vmax.f32 %v1157, 0.0
      %v1195 = vmax.f32 %v1159, 0.0
      %v1196 = vmax.f32 %v1161, 0.0
      %v1197 = vmax.f32 %v1163, 0.0
      %v1198 = vmax.f32 %v1165, 0.0
      %v1199 = vmax.f32 %v1167, 0.0
      %v1200 = vmin.f32 %v1168, 1.0
      %v1201 = vmin.f32 %v1169, 1.0
      %v1202 = vmin.f32 %v1170, 1.0
      %v1203 = vmin.f32 %v1171, 1.0
      %v1204 = vmin.f32 %v1172, 1.0
      %v1205 = vmin.f32 %v1173, 1.0
      %v1206 = vmin.f32 %v1174, 1.0
      %v1207 = vmin.f32 %v1175, 1.0
      %v1208 = vmin.f32 %v1176, 1.0
      %v1209 = vmin.f32 %v1177, 1.0
      %v1210 = vmin.f32 %v1178, 1.0
      %v1211 = vmin.f32 %v1179, 1.0
      %v1212 = vmin.f32 %v1180, 1.0
      %v1213 = vmin.f32 %v1181, 1.0
      %v1214 = vmin.f32 %v1182, 1.0
      %v1215 = vmin.f32 %v1183, 1.0
      %v1216 = vmin.f32 %v1184, 1.0
      %v1217 = vmin.f32 %v1185, 1.0
      %v1218 = vmin.f32 %v1186, 1.0
      %v1219 = vmin.f32 %v1187, 1.0
      %v1220 = vmin.f32 %v1188, 1.0
      %v1221 = vmin.f32 %v1189, 1.0
      %v1222 = vmin.f32 %v1190, 1.0
      %v1223 = vmin.f32 %v1191, 1.0
      %v1224 = vmin.f32 %v1192, 1.0
      %v1225 = vmin.f32 %v1193, 1.0
      %v1226 = vmin.f32 %v1194, 1.0
      %v1227 = vmin.f32 %v1195, 1.0
      %v1228 = vmin.f32 %v1196, 1.0
      %v1229 = vmin.f32 %v1197, 1.0
      %v1230 = vmin.f32 %v1198, 1.0
      %v1231 = vmin.f32 %v1199, 1.0
      %vm1232 = vcmask 7168
      %1233 = vst.msk [vmem:[%s303] sm:$0xff] %vm1232, %v1200
      %1234 = vst.msk [vmem:[%s303 + $0x8] sm:$0xff] %vm1232, %v1201
      %1235 = vst.msk [vmem:[%s303 + $0x10] sm:$0xff] %vm1232, %v1202
      %1236 = vst.msk [vmem:[%s303 + $0x18] sm:$0xff] %vm1232, %v1203
      %1237 = vst.msk [vmem:[%s303 + $0x20] sm:$0xff] %vm1232, %v1204
      %1238 = vst.msk [vmem:[%s303 + $0x28] sm:$0xff] %vm1232, %v1205
      %1239 = vst.msk [vmem:[%s303 + $0x30] sm:$0xff] %vm1232, %v1206
      %1240 = vst.msk [vmem:[%s303 + $0x38] sm:$0xff] %vm1232, %v1207
      %1241 = vst.msk [vmem:[%s303 + $0x40] sm:$0xff] %vm1232, %v1208
      %1242 = vst.msk [vmem:[%s303 + $0x48] sm:$0xff] %vm1232, %v1209
      %1243 = vst.msk [vmem:[%s303 + $0x50] sm:$0xff] %vm1232, %v1210
      %1244 = vst.msk [vmem:[%s303 + $0x58] sm:$0xff] %vm1232, %v1211
      %1245 = vst.msk [vmem:[%s303 + $0x60] sm:$0xff] %vm1232, %v1212
      %1246 = vst.msk [vmem:[%s303 + $0x68] sm:$0xff] %vm1232, %v1213
      %1247 = vst.msk [vmem:[%s303 + $0x70] sm:$0xff] %vm1232, %v1214
      %1248 = vst.msk [vmem:[%s303 + $0x78] sm:$0xff] %vm1232, %v1215
      %1249 = vst.msk [vmem:[%s303 + $0x80] sm:$0xff] %vm1232, %v1216
      %1250 = vst.msk [vmem:[%s303 + $0x88] sm:$0xff] %vm1232, %v1217
      %1251 = vst.msk [vmem:[%s303 + $0x90] sm:$0xff] %vm1232, %v1218
      %1252 = vst.msk [vmem:[%s303 + $0x98] sm:$0xff] %vm1232, %v1219
      %1253 = vst.msk [vmem:[%s303 + $0xa0] sm:$0xff] %vm1232, %v1220
      %1254 = vst.msk [vmem:[%s303 + $0xa8] sm:$0xff] %vm1232, %v1221
      %1255 = vst.msk [vmem:[%s303 + $0xb0] sm:$0xff] %vm1232, %v1222
      %1256 = vst.msk [vmem:[%s303 + $0xb8] sm:$0xff] %vm1232, %v1223
      %1257 = vst.msk [vmem:[%s303 + $0xc0] sm:$0xff] %vm1232, %v1224
      %1258 = vst.msk [vmem:[%s303 + $0xc8] sm:$0xff] %vm1232, %v1225
      %1259 = vst.msk [vmem:[%s303 + $0xd0] sm:$0xff] %vm1232, %v1226
      %1260 = vst.msk [vmem:[%s303 + $0xd8] sm:$0xff] %vm1232, %v1227
      %1261 = vst.msk [vmem:[%s303 + $0xe0] sm:$0xff] %vm1232, %v1228
      %1262 = vst.msk [vmem:[%s303 + $0xe8] sm:$0xff] %vm1232, %v1229
      %1263 = vst.msk [vmem:[%s303 + $0xf0] sm:$0xff] %vm1232, %v1230
      %1264 = vst.msk [vmem:[%s303 + $0xf8] sm:$0xff] %vm1232, %v1231
      %s1265 = smul.u32 32, %s22
      %p1266 = scmp.lt.s32.totalorder %s21, 1
      %s1267 = scalar_select %p1266, %s21, 1
      %p1268 = scmp.lt.s32.totalorder %s1265, 31
      %s1269 = scalar_select %p1268, %s1265, 31
      %s1270 = smul.addr %s1267, 32
      %s1271 = sadd.s32 %s1269, %s1270
      %s1272 = smul.addr %s1271, 8
      %s1273 = scalar_lea.vmem %s4, %s1272
      %s1274 = smul.u32 32, %s22
      %p1275 = scmp.lt.s32.totalorder %s21, 1
      %s1276 = scalar_select %p1275, %s21, 1
      %p1277 = scmp.lt.s32.totalorder %s1274, 31
      %s1278 = scalar_select %p1277, %s1274, 31
      %s1279 = smul.addr %s1276, 32
      %s1280 = sadd.s32 %s1278, %s1279
      %s1281 = smul.addr %s1280, 8
      %s1282 = scalar_lea.vmem %s5, %s1281
      // Predicated region
      $region37: #{generator_forward.1} parent=35 // pred_check
        %p1283 = pneg %p145
      $region38: #{generator_forward.1} parent=35 // pred_check_branch
        %1285 = sbr.rel (%p1283) target = $region40
      $region39: #{generator_forward.1} parent=35 // pred_region
        %s1286 = smul.u32 32, %s22
      $region40: #{generator_forward.1} parent=35 // pred_fallthru
        _
      // Predicated region
      $region41: #{generator_forward.1} parent=35 // pred_check
        %p1287 = pneg %p173
      $region42: #{generator_forward.1} parent=35 // pred_check_branch
        %1289 = sbr.rel (%p1287) target = $region44
      $region43: #{generator_forward.1} parent=35 // pred_region
        %s1290 = smul.u32 32, %s22
      $region44: #{generator_forward.1} parent=35 // pred_fallthru
        _
    $region36: #{generator_forward.1} parent=5 // pred_fallthru
      _
    %p1291 = scmp.le.s32.totalorder 2, %s12
    // Predicated region
    $region45: #{generator_forward.1} parent=5 // pred_check
      %p1292 = pneg %p1291
    $region46: #{generator_forward.1} parent=5 // pred_check_branch
      %1294 = sbr.rel (%p1292) target = $region48
    $region47: #{generator_forward.1} parent=5 // pred_region
      %s1295 = ssub.s32 %s12, 2
      // Predicated region
      $region49: #{generator_forward.1} parent=47 // pred_check
        %p1296 = pneg %p151
      $region50: #{generator_forward.1} parent=47 // pred_check_branch
        %1298 = sbr.rel (%p1296) target = $region52
      $region51: #{generator_forward.1} parent=47 // pred_region
        %s1299 = smul.u32 32, %s24
        %p1300 = scmp.lt.s32.totalorder %s23, 1
        %s1301 = scalar_select %p1300, %s23, 1
        %p1302 = scmp.lt.s32.totalorder %s1299, 31
        %s1303 = scalar_select %p1302, %s1299, 31
        %s1304 = smul.addr %s1301, 32
        %s1305 = sadd.s32 %s1303, %s1304
        %s1306 = smul.addr %s1305, 8
        %s1307 = scalar_lea.vmem %s4, %s1306
      $region52: #{generator_forward.1} parent=47 // pred_fallthru
        _
      // Predicated region
      $region53: #{generator_forward.1} parent=47 // pred_check
        %p1308 = pneg %p179
      $region54: #{generator_forward.1} parent=47 // pred_check_branch
        %1310 = sbr.rel (%p1308) target = $region56
      $region55: #{generator_forward.1} parent=47 // pred_region
        %s1311 = smul.u32 32, %s24
        %p1312 = scmp.lt.s32.totalorder %s23, 1
        %s1313 = scalar_select %p1312, %s23, 1
        %p1314 = scmp.lt.s32.totalorder %s1311, 31
        %s1315 = scalar_select %p1314, %s1311, 31
        %s1316 = smul.addr %s1313, 32
        %s1317 = sadd.s32 %s1315, %s1316
        %s1318 = smul.addr %s1317, 8
        %s1319 = scalar_lea.vmem %s5, %s1318
      $region56: #{generator_forward.1} parent=47 // pred_fallthru
        _
    $region48: #{generator_forward.1} parent=5 // pred_fallthru
      _
  $region6: #{generator_forward.1} parent=0 // loop_footer
    %s16 = sadd.s32 1, %s12
  $region7: #{generator_forward.1} parent=0 // loop_footer_branch
    %11 = sbr.rel target = $region3
  $region8: #{generator_forward.1} parent=0 // loop_exit
    _

</llo_original>
